<compile_context>
chip_gen: v5e
topology: v5e:2x2
jax: 0.10.0
libtpu: 0.0.40
codegen_flags: <defaults>
</compile_context>

<pallas_src>
import jax
import jax.numpy as jnp
from jax.experimental import pallas as pl
from jax.experimental.pallas import tpu as pltpu


# ------------------------------ tuning knobs ----------------------------------
_MIN_PALLAS_BYTES = 1 << 20           # below this, let XLA handle it (fusion wins)
_MAX_BLOCK_BYTES = 6 * 1024 * 1024    # target block size (in+out dbl-buffered ~4x)
_MIN_BLOCK_BYTES = 512 * 1024         # don't shrink blocks below this for steps
_MIN_GRID_STEPS = 4                   # keep v7x's 2 TCs busy / allow pipelining
_VMEM_LIMIT_BYTES = 48 * 1024 * 1024  # explicit: v5e default is only 16 MiB


def _smallest_prime_factor(n):
    for p in range(2, int(n ** 0.5) + 1):
        if n % p == 0:
            return p
    return n


def _choose_tiles(batch, groups, slab_bytes):
    """Pick (bt, ct): block covers bt batches x ct channel-groups x full spatial."""
    ct = 1
    for d in range(1, groups + 1):
        if groups % d == 0 and d * slab_bytes <= _MAX_BLOCK_BYTES:
            ct = d
    bt = 1
    if ct == groups:
        for d in range(1, batch + 1):
            if batch % d == 0 and d * groups * slab_bytes <= _MAX_BLOCK_BYTES:
                bt = d

    # Keep enough grid steps for double-buffering and v7x core sharding,
    # preferring to shrink the channel tile before the batch tile.
    def _steps(b, c):
        return (batch // b) * (groups // c)

    while _steps(bt, ct) < _MIN_GRID_STEPS:
        blk = bt * ct * slab_bytes
        if ct > 1 and blk // _smallest_prime_factor(ct) >= _MIN_BLOCK_BYTES:
            ct //= _smallest_prime_factor(ct)
        elif bt > 1 and blk // _smallest_prime_factor(bt) >= _MIN_BLOCK_BYTES:
            bt //= _smallest_prime_factor(bt)
        else:
            break
    return bt, ct


# --------------------------- sub-32-bit lane packing ---------------------------
def _maybe_pack_u32(x):
    """Bitcast adjacent W elements (pairs for bf16, quads for 8-bit) to uint32."""
    itemsize = jnp.dtype(x.dtype).itemsize
    if itemsize >= 4:
        return x, None
    pack = 4 // itemsize
    w = x.shape[-1]
    if w % pack != 0:
        return x, None
    xr = x.reshape(x.shape[:-1] + (w // pack, pack))
    return jax.lax.bitcast_convert_type(xr, jnp.uint32), (x.dtype, pack)


def _maybe_unpack_u32(y, meta):
    if meta is None:
        return y
    dtype, pack = meta
    yr = jax.lax.bitcast_convert_type(y, jnp.dtype(dtype))  # appends dim of size pack
    return yr.reshape(y.shape[:-1] + (y.shape[-1] * pack,))


# ------------------------------ kernel bodies ----------------------------------
def _squeeze_kernel(x_ref, o_ref):
    # x_ref: (bt, ct, h_out, factor*W)   [contiguous view of the input]
    # o_ref: (bt, ct, factor, h_out, W)  [contiguous view of the output]
    w = o_ref.shape[-1]
    factor = o_ref.shape[2]
    for f in range(factor):
        # One whole-block copy per f; contiguous (non-strided) lane slice.
        o_ref[:, :, f, :, :] = x_ref[:, :, :, pl.ds(f * w, w)]


def _unsqueeze_kernel(x_ref, o_ref):
    # x_ref: (bt, ct, factor, H, W)
    # o_ref: (bt, ct, H, factor*W)   [lane-dense output]
    w = x_ref.shape[-1]
    factor = x_ref.shape[2]
    for f in range(factor):
        o_ref[:, :, :, pl.ds(f * w, w)] = x_ref[:, :, f, :, :]


# ----------------------------- pure-JAX references -----------------------------
def squeeze2d_ref(x, factor=2):
    if factor == 1:
        return x
    B, C, H, W = x.shape
    x = x.reshape(B, C, H // factor, factor, W, 1)
    x = jnp.transpose(x, (0, 1, 3, 5, 2, 4))
    return x.reshape(B, C * factor, H // factor, W)


def unsqueeze2d_ref(x, factor=2):
    if factor == 1:
        return x
    B, C, H, W = x.shape
    x = x.reshape(B, C // factor, factor, 1, H, W)
    x = jnp.transpose(x, (0, 1, 4, 2, 5, 3))
    return x.reshape(B, C // factor, H * factor, W)


# -------------------------------- squeeze2d ------------------------------------
def squeeze2d_pallas(x, factor=2):
    assert factor >= 1 and isinstance(factor, int)
    if factor == 1:
        return x
    B, C, H, W = x.shape
    assert H % factor == 0, '{}'.format((H, W))
    itemsize = jnp.dtype(x.dtype).itemsize
    nbytes = B * C * H * W * itemsize
    if nbytes < _MIN_PALLAS_BYTES:
        # Tiny tensors: custom-call + DMA overhead loses to XLA fusion.
        return squeeze2d_ref(x, factor)

    xp, meta = _maybe_pack_u32(x)
    if meta is None and itemsize < 4:
        # Narrow dtype we cannot pack safely: avoid splitting packed sublanes.
        return squeeze2d_ref(x, factor)

    Wp = xp.shape[-1]
    p_itemsize = jnp.dtype(xp.dtype).itemsize
    h_out = H // factor

    # Free (contiguous) wrapper reshapes on both sides.
    x_in = xp.reshape(B, C, h_out, factor * Wp)
    bt, ct = _choose_tiles(B, C, H * Wp * p_itemsize)

    out5 = pl.pallas_call(
        _squeeze_kernel,
        out_shape=jax.ShapeDtypeStruct((B, C, factor, h_out, Wp), xp.dtype),
        grid=(B // bt, C // ct),
        in_specs=[pl.BlockSpec((bt, ct, h_out, factor * Wp),
                               lambda b, c: (b, c, 0, 0))],
        out_specs=pl.BlockSpec((bt, ct, factor, h_out, Wp),
                               lambda b, c: (b, c, 0, 0, 0)),
        compiler_params=pltpu.CompilerParams(
            dimension_semantics=("parallel", "parallel"),
            vmem_limit_bytes=_VMEM_LIMIT_BYTES),
        cost_estimate=pl.CostEstimate(
            flops=0, transcendentals=0,
            bytes_accessed=2 * B * C * H * Wp * p_itemsize),
    )(x_in)

    out = out5.reshape(B, C * factor, h_out, Wp)
    return _maybe_unpack_u32(out, meta)


# ------------------------------- unsqueeze2d -----------------------------------
def unsqueeze2d_pallas(x, factor=2):
    assert factor >= 1 and isinstance(factor, int)
    if factor == 1:
        return x
    B, C, H, W = x.shape
    assert C % factor == 0, '{}'.format(C)
    C_out = C // factor
    itemsize = jnp.dtype(x.dtype).itemsize
    nbytes = B * C * H * W * itemsize
    if nbytes < _MIN_PALLAS_BYTES:
        return unsqueeze2d_ref(x, factor)

    xp, meta = _maybe_pack_u32(x)
    if meta is None and itemsize < 4:
        return unsqueeze2d_ref(x, factor)

    Wp = xp.shape[-1]
    p_itemsize = jnp.dtype(xp.dtype).itemsize

    x5 = xp.reshape(B, C_out, factor, H, Wp)
    bt, ct = _choose_tiles(B, C_out, factor * H * Wp * p_itemsize)

    out4 = pl.pallas_call(
        _unsqueeze_kernel,
        out_shape=jax.ShapeDtypeStruct((B, C_out, H, factor * Wp), xp.dtype),
        grid=(B // bt, C_out // ct),
        in_specs=[pl.BlockSpec((bt, ct, factor, H, Wp),
                               lambda b, c: (b, c, 0, 0, 0))],
        out_specs=pl.BlockSpec((bt, ct, H, factor * Wp),
                               lambda b, c: (b, c, 0, 0)),
        compiler_params=pltpu.CompilerParams(
            dimension_semantics=("parallel", "parallel"),
            vmem_limit_bytes=_VMEM_LIMIT_BYTES),
        cost_estimate=pl.CostEstimate(
            flops=0, transcendentals=0,
            bytes_accessed=2 * B * C * H * Wp * p_itemsize),
    )(x5)

    out = out4.reshape(B, C_out, H * factor, Wp)
    return _maybe_unpack_u32(out, meta)


# -------------------------------- SqueezeLayer ---------------------------------
class SqueezeLayer:
    """JAX/Pallas port of glow.modules.SqueezeLayer (no learnable params)."""

    def __init__(self, factor):
        self.factor = factor

    def forward(self, input, cond=None, logdet=None, reverse=False):
        fn = unsqueeze2d_pallas if reverse else squeeze2d_pallas
        output = fn(input, self.factor)
        cond_out = None if cond is None else fn(cond, self.factor)
        return (output, cond_out, logdet)

    def squeeze_cond(self, cond):
        return squeeze2d_pallas(cond, self.factor)


# ------------------------------------ tests ------------------------------------
if __name__ == "__main__":
    key = jax.random.PRNGKey(0)
    k1, k2, k3, k4 = jax.random.split(key, 4)
    factor = 2
    layer = SqueezeLayer(factor)

    # --- small module-sized shapes (matches the original test) ------------------
    B, C, H, W = 2, 4, 16, 16
    Cc = 3  # cond channel count
    x = jax.random.normal(k1, (B, C, H, W), dtype=jnp.float32)
    cond = jax.random.normal(k2, (B, Cc, H, W), dtype=jnp.float32)

    out, cond_out, logdet = layer.forward(x, cond, logdet=None, reverse=False)
    out = jax.block_until_ready(out)
    cond_out = jax.block_until_ready(cond_out)

    assert out.shape == (B, C * factor, H // factor, W)
    assert cond_out.shape == (B, Cc * factor, H // factor, W)
    assert jnp.allclose(out, squeeze2d_ref(x, factor))
    assert jnp.allclose(cond_out, squeeze2d_ref(cond, factor))

    # reverse (unsqueeze) -- round-trips back to the originals
    x_rec, cond_rec, _ = layer.forward(out, cond_out, logdet=None, reverse=True)
    x_rec = jax.block_until_ready(x_rec)
    cond_rec = jax.block_until_ready(cond_rec)
    assert jnp.allclose(x_rec, x)
    assert jnp.allclose(cond_rec, cond)
    assert jnp.allclose(x_rec, unsqueeze2d_ref(out, factor))

    # cond=None guard (original PyTorch would crash; we pass it through)
    out_only, none_cond, _ = layer.forward(x, None, logdet=None, reverse=False)
    jax.block_until_ready(out_only)
    assert none_cond is None
    assert jnp.allclose(out_only, squeeze2d_ref(x, factor))

    # --- a larger fp32 shape that actually exercises the Pallas kernels ---------
    B2, C2, H2, W2 = 4, 16, 64, 128   # 2 MiB -> Pallas path
    y = jax.random.normal(k3, (B2, C2, H2, W2), dtype=jnp.float32)
    y_sq = jax.block_until_ready(squeeze2d_pallas(y, factor))
    assert y_sq.shape == (B2, C2 * factor, H2 // factor, W2)
    assert jnp.allclose(y_sq, squeeze2d_ref(y, factor))
    y_rt = jax.block_until_ready(unsqueeze2d_pallas(y_sq, factor))
    assert jnp.allclose(y_rt, y)

    # --- bf16 exercises the wrapper-side uint32 lane packing --------------------
    B3, C3, H3, W3 = 4, 16, 64, 256   # 2 MiB bf16 -> Pallas path
    z = jax.random.normal(k4, (B3, C3, H3, W3), dtype=jnp.bfloat16)
    z_sq = jax.block_until_ready(squeeze2d_pallas(z, factor))
    assert jnp.array_equal(z_sq, squeeze2d_ref(z, factor))   # pure data movement
    z_rt = jax.block_until_ready(unsqueeze2d_pallas(z_sq, factor))
    assert jnp.array_equal(z_rt, z)

    print("KERNEL_OK")
</pallas_src>

<mosaic_0001>
module attributes {stable_mosaic.version = 11 : i64} {
  func.func @_squeeze_kernel(%arg0: i32, %arg1: i32, %arg2: memref<4x4x32x256xf32, #tpu.memory_space<vmem>>, %arg3: memref<4x4x2x32x128xf32, #tpu.memory_space<vmem>>) attributes {dimension_semantics = [#tpu.dimension_semantics<parallel>, #tpu.dimension_semantics<parallel>], iteration_bounds = array<i64: 1, 4>, scalar_prefetch = 0 : i64, scratch_operands = 0 : i64, tpu.core_type = #tpu.core_type<tc>, window_params = [{transform_indices = @transform_0, window_bounds = array<i64: 4, 4, 32, 256>}, {transform_indices = @transform_1, window_bounds = array<i64: 4, 4, 2, 32, 128>}]} {
    %c0 = arith.constant 0 : index
    %c0_0 = arith.constant 0 : index
    %c0_1 = arith.constant 0 : index
    %c0_2 = arith.constant 0 : index
    %0 = vector.load %arg2[%c0, %c0_0, %c0_1, %c0_2] : memref<4x4x32x256xf32, #tpu.memory_space<vmem>>, vector<4x4x32x128xf32>
    %c0_3 = arith.constant 0 : index
    %c0_4 = arith.constant 0 : index
    %c0_5 = arith.constant 0 : index
    %c0_6 = arith.constant 0 : index
    %c0_7 = arith.constant 0 : index
    %1 = vector.load %arg3[%c0_3, %c0_4, %c0_5, %c0_6, %c0_7] : memref<4x4x2x32x128xf32, #tpu.memory_space<vmem>>, vector<4x4x1x32x128xf32>
    %2 = vector.shape_cast %1 : vector<4x4x1x32x128xf32> to vector<4x4x32x128xf32>
    %3 = vector.shape_cast %0 : vector<4x4x32x128xf32> to vector<4x4x1x32x128xf32>
    tpu.vector_store %arg3[%c0_3, %c0_4, %c0_5, %c0_6, %c0_7], %3 {strides = array<i32>} : memref<4x4x2x32x128xf32, #tpu.memory_space<vmem>>, vector<4x4x1x32x128xf32>,
    %c0_8 = arith.constant 0 : index
    %c0_9 = arith.constant 0 : index
    %c0_10 = arith.constant 0 : index
    %c128 = arith.constant 128 : index
    %4 = vector.load %arg2[%c0_8, %c0_9, %c0_10, %c128] : memref<4x4x32x256xf32, #tpu.memory_space<vmem>>, vector<4x4x32x128xf32>
    %c0_11 = arith.constant 0 : index
    %c0_12 = arith.constant 0 : index
    %c1 = arith.constant 1 : index
    %c0_13 = arith.constant 0 : index
    %c0_14 = arith.constant 0 : index
    %5 = vector.load %arg3[%c0_11, %c0_12, %c1, %c0_13, %c0_14] : memref<4x4x2x32x128xf32, #tpu.memory_space<vmem>>, vector<4x4x1x32x128xf32>
    %6 = vector.shape_cast %5 : vector<4x4x1x32x128xf32> to vector<4x4x32x128xf32>
    %7 = vector.shape_cast %4 : vector<4x4x32x128xf32> to vector<4x4x1x32x128xf32>
    tpu.vector_store %arg3[%c0_11, %c0_12, %c1, %c0_13, %c0_14], %7 {strides = array<i32>} : memref<4x4x2x32x128xf32, #tpu.memory_space<vmem>>, vector<4x4x1x32x128xf32>,
    return
  }
  func.func @transform_0(%arg0: i32, %arg1: i32) -> (i32, i32, i32, i32) {
    %c0_i32 = arith.constant 0 : i32
    %c0_i32_0 = arith.constant 0 : i32
    %c0_i32_1 = arith.constant 0 : i32
    return %arg0, %arg1, %c0_i32, %c0_i32_0 : i32, i32, i32, i32
  }
  func.func @transform_1(%arg0: i32, %arg1: i32) -> (i32, i32, i32, i32, i32) {
    %c0_i32 = arith.constant 0 : i32
    %c0_i32_0 = arith.constant 0 : i32
    %c0_i32_1 = arith.constant 0 : i32
    %c0_i32_2 = arith.constant 0 : i32
    return %arg0, %arg1, %c0_i32, %c0_i32_0, %c0_i32_1 : i32, i32, i32, i32, i32
  }
}

</mosaic_0001>

<llo_original>
// kernel: tpu_custom_call.1
$region0: #{tpu_custom_call.1}
  #allocation0 [shape = 'u32[]', space=smem, size = 0x4, offset = 0x4, fixed_abs, tag = 'smem constant byte address 0x4 - core index']
  #allocation1 [shape = 'u32[72,128]{1,0:T(1,128)}', space=vmem, size = 0x9000, scoped, tag = 'internal scratch']
  #allocation6 [shape = 's32[]', space=sflag, size = 0x4, offset = 0, fixed_abs, tag = 'sflag constant byte address 0x0 - dummy sync flag']
  #allocation8 [shape = 's32[]', space=sflag, size = 0x4, offset = 0, fixed_abs, tag = 'sflag constant byte address 0x0 - dummy sync flag']
  %s0 = inlined_call_operand.hbm [shape: f32[4,16,32,256], index: 0, kind: input, shape index: {}]
  %s1 = inlined_call_operand.hbm [shape: f32[4,16,2,32,128], index: 1, kind: output, shape index: {}]
  %s2 = sld [smem:[#allocation0]]
  $region41: #{tpu_custom_call.1} parent=0
    _
  %s4 = ssub.s32 1, %s2
  %s5 = scalar_select 0, %s4, %s2
  $region1: #{tpu_custom_call.1} parent=0
    #allocation2 [shape = 'u8[1048576]{0}', space=vmem, size = 0x100000, scoped, tag = 'input window, operand 0']
    #allocation3 [shape = 's32[2]{0}', space=sflag, size = 0x8, scoped, tag = 'scoped memory for tpu_custom_call.1']
    #allocation4 [shape = 's32[2]{0}', space=sflag, size = 0x8, scoped, tag = 'scoped memory for tpu_custom_call.1']
    #allocation5 [shape = 'u8[1048576]{0}', space=vmem, size = 0x100000, scoped, tag = 'output window, operand 0']
    %6 = vsyncpa [#allocation3], 0
    %s7 = scalar_lea.sflag [#allocation3], 1
    %8 = vsyncpa %s7, 0
    %9 = vsyncpa [#allocation4], 0
    %s10 = scalar_lea.sflag [#allocation4], 1
    %11 = vsyncpa %s10, 0
    loop: start=0, step=1, limit=6
    $region2: #{tpu_custom_call.1} parent=1 // loop_pre_header
      _
    $region3: #{tpu_custom_call.1} parent=1 // loop_header
      %s13 = sphi 0, %s17
      %p14 = scmp.ge.s32.totalorder %s13, 6
      %s20 = sphi 0, %s32
      %s21 = sphi 0, %s28
      %s22 = sphi 0, %s20
      %s23 = sphi 0, %s21
      %s24 = sphi 0, %s22
      %s25 = sphi 0, %s23
      %s37 = sphi 0, %s39
      %s40 = sphi 0, %s37
      %s41 = sphi 0, %s40
      %s57 = sphi 0, %s41
      %s65 = sphi 0, %s67
      %s68 = sphi 0, %s65
      %s69 = sphi 0, %s68
      %s85 = sphi 0, %s69
    $region4: #{tpu_custom_call.1} parent=1 // loop_header_branch
      %16 = sbr.rel (%p14) target = $region8
    $region5: #{tpu_custom_call.1} parent=1 // loop_body
      %s18 = ssub.s32 %s13, 1
      %s19 = ssub.s32 %s13, 2
      %s26 = sadd.s32 1, %s21
      %p27 = scmp.ge.s32.totalorder %s26, 4
      %s28 = scalar_select %p27, 0, %s26
      %s29 = sadd.s32 1, %s20
      %s30 = scalar_select %p27, %s29, %s20
      %p31 = scmp.ge.s32.totalorder %s30, 1
      %s32 = scalar_select %p31, 0, %s30
      %s33 = ssub.s32 %s20, %s32
      %s34 = ssub.s32 %s21, %s28
      %s35 = sor.u32 %s33, %s34
      %p36 = scmp.eq.s32.totalorder %s35, 0
      %s38 = sadd.s32 %s37, 1
      %s39 = scalar_select %p36, %s37, %s38
      %p42 = pneg %p36
      %p43 = scmp.eq.s32.totalorder %s13, 3
      %p44 = por %p42, %p43
      %p45 = scmp.ne.s32.totalorder %s37, %s40
      %p46 = scmp.eq.s32.totalorder %s13, 0
      %p47 = por %p45, %p46
      %p48 = scmp.ne.s32.totalorder %s37, %s40
      %p49 = scmp.eq.s32.totalorder %s18, 3
      %p50 = por %p48, %p49
      %p51 = scmp.ne.s32.totalorder %s40, %s41
      %p52 = scmp.eq.s32.totalorder %s18, 0
      %p53 = por %p51, %p52
      %p54 = scmp.ne.s32.totalorder %s40, %s41
      %p55 = scmp.eq.s32.totalorder %s19, 3
      %p56 = por %p54, %p55
      %p58 = scmp.ne.s32.totalorder %s41, %s57
      %p59 = scmp.eq.s32.totalorder %s19, 0
      %p60 = por %p58, %p59
      %s61 = ssub.s32 %s20, %s32
      %s62 = ssub.s32 %s21, %s28
      %s63 = sor.u32 %s61, %s62
      %p64 = scmp.eq.s32.totalorder %s63, 0
      %s66 = sadd.s32 %s65, 1
      %s67 = scalar_select %p64, %s65, %s66
      %p70 = pneg %p64
      %p71 = scmp.eq.s32.totalorder %s13, 3
      %p72 = por %p70, %p71
      %p73 = scmp.ne.s32.totalorder %s65, %s68
      %p74 = scmp.eq.s32.totalorder %s13, 0
      %p75 = por %p73, %p74
      %p76 = scmp.ne.s32.totalorder %s65, %s68
      %p77 = scmp.eq.s32.totalorder %s18, 3
      %p78 = por %p76, %p77
      %p79 = scmp.ne.s32.totalorder %s68, %s69
      %p80 = scmp.eq.s32.totalorder %s18, 0
      %p81 = por %p79, %p80
      %p82 = scmp.ne.s32.totalorder %s68, %s69
      %p83 = scmp.eq.s32.totalorder %s19, 3
      %p84 = por %p82, %p83
      %p86 = scmp.ne.s32.totalorder %s69, %s85
      %p87 = scmp.eq.s32.totalorder %s19, 0
      %p88 = por %p86, %p87
      %p89 = scmp.le.s32.totalorder 1, %s13
      %p90 = scmp.lt.s32.totalorder %s13, 5
      %p91 = pnand %p89, %p90
      %p92 = pneg %p91
      // Predicated region
      $region9: #{tpu_custom_call.1} parent=5 // pred_check
        _
      $region10: #{tpu_custom_call.1} parent=5 // pred_check_branch
        %94 = sbr.rel (%p91) target = $region12
      $region11: #{tpu_custom_call.1} parent=5 // pred_region
        %s95 = ssub.s32 %s13, 1
      $region12: #{tpu_custom_call.1} parent=5 // pred_fallthru
        _
      %p96 = scmp.lt.s32.totalorder %s13, 4
      // Predicated region
      $region13: #{tpu_custom_call.1} parent=5 // pred_check
        %p97 = pneg %p96
      $region14: #{tpu_custom_call.1} parent=5 // pred_check_branch
        %99 = sbr.rel (%p97) target = $region16
      $region15: #{tpu_custom_call.1} parent=5 // pred_region
        // Predicated region
        $region17: #{tpu_custom_call.1} parent=15 // pred_check
          %p100 = pneg %p47
        $region18: #{tpu_custom_call.1} parent=15 // pred_check_branch
          %102 = sbr.rel (%p100) target = $region20
        $region19: #{tpu_custom_call.1} parent=15 // pred_region
          #allocation7 [shape = 'u32[6]{0}', space=smem, size = 0x18, scoped, tag = 'DMA stride descriptor']
          %s103 = sand.u32 %s37, 1
          %s104 = scalar_lea.sflag [#allocation3], %s103
          %s105 = sand.u32 %s37, 1
          %s106 = smul.addr %s105, 1024
          %s107 = scalar_lea.vmem [#allocation2], %s106
          %s108 = smul.u32 4, %s20
          %s109 = smul.u32 4, %s21
          %111 = vsyncadd %s104, 0
          %s112 = smul.addr %s109, 8
          %s113 = smul.addr %s108, 128
          %s114 = sadd.s32 %s112, %s113
          %s115 = smul.addr %s114, 8
          %s116 = scalar_lea.hbm %s0, %s115
          %s118 = sshll.u32 1, 14
          %s119 = sxor.u32 4294967295, %s118
          %s121 = sld [smem:[#allocation0]]
          %s122 = sadd.s32 2, %s121
          %s124 = sshll.u32 7, 26
          %s125 = sxor.u32 4294967295, %s124
          %s126 = sand.u32 0, %s125
          %s127 = sshll.u32 %s122, 26
          %s128 = sor.u32 %s126, %s127
          %s129 = sshll.u32 %s116, 4
          %s130 = int_to_ptr.hbm [resolvable:$true] %s129
          %s131 = sshll.u32 %s107, 4
          %s132 = int_to_ptr.vmem [resolvable:$true] %s131
          %138 = sst [smem:[#allocation7]] 16384
          %s139 = scalar_lea.smem [#allocation7], 1
          %140 = sst [smem:[%s139]] 4096
          %s141 = scalar_lea.smem [#allocation7], 2
          %142 = sst [smem:[%s141]] 16
          %s143 = scalar_lea.smem [#allocation7], 3
          %144 = sst [smem:[%s143]] 256
          %s145 = scalar_lea.smem [#allocation7], 4
          %146 = sst [smem:[%s145]] 256
          %s147 = scalar_lea.smem [#allocation7], 5
          %148 = sst [smem:[%s147]] 16
          %150 = dma.general %s130, 16384, %s132, %s104, [#allocation6], [#allocation7], %s128, 0
        $region20: #{tpu_custom_call.1} parent=15 // pred_fallthru
          _
      $region16: #{tpu_custom_call.1} parent=5 // pred_fallthru
        _
      %p151 = scmp.le.s32.totalorder 1, %s13
      %p152 = scmp.lt.s32.totalorder %s13, 5
      %p153 = pnand %p151, %p152
      %p154 = pneg %p153
      // Predicated region
      $region21: #{tpu_custom_call.1} parent=5 // pred_check
        _
      $region22: #{tpu_custom_call.1} parent=5 // pred_check_branch
        %156 = sbr.rel (%p153) target = $region24
      $region23: #{tpu_custom_call.1} parent=5 // pred_region
        %s157 = ssub.s32 %s13, 1
        %s158 = sand.u32 %s40, 1
        %s159 = scalar_lea.sflag [#allocation3], %s158
        %s160 = sand.u32 %s40, 1
        %s161 = smul.addr %s160, 1024
        %s162 = scalar_lea.vmem [#allocation2], %s161
        // Predicated region
        $region25: #{tpu_custom_call.1} parent=23 // pred_check
          %p163 = pneg %p53
        $region26: #{tpu_custom_call.1} parent=23 // pred_check_branch
          %165 = sbr.rel (%p163) target = $region28
        $region27: #{tpu_custom_call.1} parent=23 // pred_region
          %167 = dma.done %s159, 16384
        $region28: #{tpu_custom_call.1} parent=23 // pred_fallthru
          _
        %s168 = sand.u32 %s40, 1
        %s169 = scalar_lea.sflag [#allocation3], %s168
        %s170 = sand.u32 %s40, 1
        %s171 = smul.addr %s170, 1024
        %s172 = scalar_lea.vmem [#allocation2], %s171
        %p173 = pneg %p53
        %p174 = pneg %p50
        %p175 = pneg %p81
        %p176 = pneg %p78
        %s177 = sand.u32 %s68, 1
        %s178 = scalar_lea.sflag [#allocation4], %s177
        %s179 = sand.u32 %s68, 1
        %s180 = smul.addr %s179, 1024
        %s181 = scalar_lea.vmem [#allocation5], %s180
        %s182 = smul.u32 4, %s22
        %s183 = smul.u32 4, %s23
        %s184 = smul.u32 4, %s22
        %s185 = smul.u32 4, %s23
        %v186 = vld [vmem:[%s162] sm:$0xff]
        %v187 = vld [vmem:[%s162 + $0x10] sm:$0xff]
        %v188 = vld [vmem:[%s162 + $0x20] sm:$0xff]
        %v189 = vld [vmem:[%s162 + $0x30] sm:$0xff]
        %v190 = vld [vmem:[%s162 + $0x40] sm:$0xff]
        %v191 = vld [vmem:[%s162 + $0x50] sm:$0xff]
        %v192 = vld [vmem:[%s162 + $0x60] sm:$0xff]
        %v193 = vld [vmem:[%s162 + $0x70] sm:$0xff]
        %v194 = vld [vmem:[%s162 + $0x80] sm:$0xff]
        %v195 = vld [vmem:[%s162 + $0x90] sm:$0xff]
        %v196 = vld [vmem:[%s162 + $0xa0] sm:$0xff]
        %v197 = vld [vmem:[%s162 + $0xb0] sm:$0xff]
        %v198 = vld [vmem:[%s162 + $0xc0] sm:$0xff]
        %v199 = vld [vmem:[%s162 + $0xd0] sm:$0xff]
        %v200 = vld [vmem:[%s162 + $0xe0] sm:$0xff]
        %v201 = vld [vmem:[%s162 + $0xf0] sm:$0xff]
        %v202 = vld [vmem:[%s162 + $0x100] sm:$0xff]
        %v203 = vld [vmem:[%s162 + $0x110] sm:$0xff]
        %v204 = vld [vmem:[%s162 + $0x120] sm:$0xff]
        %v205 = vld [vmem:[%s162 + $0x130] sm:$0xff]
        %v206 = vld [vmem:[%s162 + $0x140] sm:$0xff]
        %v207 = vld [vmem:[%s162 + $0x150] sm:$0xff]
        %v208 = vld [vmem:[%s162 + $0x160] sm:$0xff]
        %v209 = vld [vmem:[%s162 + $0x170] sm:$0xff]
        %v210 = vld [vmem:[%s162 + $0x180] sm:$0xff]
        %v211 = vld [vmem:[%s162 + $0x190] sm:$0xff]
        %v212 = vld [vmem:[%s162 + $0x1a0] sm:$0xff]
        %v213 = vld [vmem:[%s162 + $0x1b0] sm:$0xff]
        %v214 = vld [vmem:[%s162 + $0x1c0] sm:$0xff]
        %v215 = vld [vmem:[%s162 + $0x1d0] sm:$0xff]
        %v216 = vld [vmem:[%s162 + $0x1e0] sm:$0xff]
        %v217 = vld [vmem:[%s162 + $0x1f0] sm:$0xff]
        %v218 = vld [vmem:[%s162 + $0x200] sm:$0xff]
        %v219 = vld [vmem:[%s162 + $0x210] sm:$0xff]
        %v220 = vld [vmem:[%s162 + $0x220] sm:$0xff]
        %v221 = vld [vmem:[%s162 + $0x230] sm:$0xff]
        %v222 = vld [vmem:[%s162 + $0x240] sm:$0xff]
        %v223 = vld [vmem:[%s162 + $0x250] sm:$0xff]
        %v224 = vld [vmem:[%s162 + $0x260] sm:$0xff]
        %v225 = vld [vmem:[%s162 + $0x270] sm:$0xff]
        %v226 = vld [vmem:[%s162 + $0x280] sm:$0xff]
        %v227 = vld [vmem:[%s162 + $0x290] sm:$0xff]
        %v228 = vld [vmem:[%s162 + $0x2a0] sm:$0xff]
        %v229 = vld [vmem:[%s162 + $0x2b0] sm:$0xff]
        %v230 = vld [vmem:[%s162 + $0x2c0] sm:$0xff]
        %v231 = vld [vmem:[%s162 + $0x2d0] sm:$0xff]
        %v232 = vld [vmem:[%s162 + $0x2e0] sm:$0xff]
        %v233 = vld [vmem:[%s162 + $0x2f0] sm:$0xff]
        %v234 = vld [vmem:[%s162 + $0x300] sm:$0xff]
        %v235 = vld [vmem:[%s162 + $0x310] sm:$0xff]
        %v236 = vld [vmem:[%s162 + $0x320] sm:$0xff]
        %v237 = vld [vmem:[%s162 + $0x330] sm:$0xff]
        %v238 = vld [vmem:[%s162 + $0x340] sm:$0xff]
        %v239 = vld [vmem:[%s162 + $0x350] sm:$0xff]
        %v240 = vld [vmem:[%s162 + $0x360] sm:$0xff]
        %v241 = vld [vmem:[%s162 + $0x370] sm:$0xff]
        %v242 = vld [vmem:[%s162 + $0x380] sm:$0xff]
        %v243 = vld [vmem:[%s162 + $0x390] sm:$0xff]
        %v244 = vld [vmem:[%s162 + $0x3a0] sm:$0xff]
        %v245 = vld [vmem:[%s162 + $0x3b0] sm:$0xff]
        %v246 = vld [vmem:[%s162 + $0x3c0] sm:$0xff]
        %v247 = vld [vmem:[%s162 + $0x3d0] sm:$0xff]
        %v248 = vld [vmem:[%s162 + $0x3e0] sm:$0xff]
        %v249 = vld [vmem:[%s162 + $0x3f0] sm:$0xff]
        %250 = vst [vmem:[%s181] sm:$0xff] %v186
        %251 = vst [vmem:[%s181 + $0x8] sm:$0xff] %v187
        %252 = vst [vmem:[%s181 + $0x10] sm:$0xff] %v188
        %253 = vst [vmem:[%s181 + $0x18] sm:$0xff] %v189
        %254 = vst [vmem:[%s181 + $0x40] sm:$0xff] %v190
        %255 = vst [vmem:[%s181 + $0x48] sm:$0xff] %v191
        %256 = vst [vmem:[%s181 + $0x50] sm:$0xff] %v192
        %257 = vst [vmem:[%s181 + $0x58] sm:$0xff] %v193
        %258 = vst [vmem:[%s181 + $0x80] sm:$0xff] %v194
        %259 = vst [vmem:[%s181 + $0x88] sm:$0xff] %v195
        %260 = vst [vmem:[%s181 + $0x90] sm:$0xff] %v196
        %261 = vst [vmem:[%s181 + $0x98] sm:$0xff] %v197
        %262 = vst [vmem:[%s181 + $0xc0] sm:$0xff] %v198
        %263 = vst [vmem:[%s181 + $0xc8] sm:$0xff] %v199
        %264 = vst [vmem:[%s181 + $0xd0] sm:$0xff] %v200
        %265 = vst [vmem:[%s181 + $0xd8] sm:$0xff] %v201
        %266 = vst [vmem:[%s181 + $0x100] sm:$0xff] %v202
        %267 = vst [vmem:[%s181 + $0x108] sm:$0xff] %v203
        %268 = vst [vmem:[%s181 + $0x110] sm:$0xff] %v204
        %269 = vst [vmem:[%s181 + $0x118] sm:$0xff] %v205
        %270 = vst [vmem:[%s181 + $0x140] sm:$0xff] %v206
        %271 = vst [vmem:[%s181 + $0x148] sm:$0xff] %v207
        %272 = vst [vmem:[%s181 + $0x150] sm:$0xff] %v208
        %273 = vst [vmem:[%s181 + $0x158] sm:$0xff] %v209
        %274 = vst [vmem:[%s181 + $0x180] sm:$0xff] %v210
        %275 = vst [vmem:[%s181 + $0x188] sm:$0xff] %v211
        %276 = vst [vmem:[%s181 + $0x190] sm:$0xff] %v212
        %277 = vst [vmem:[%s181 + $0x198] sm:$0xff] %v213
        %278 = vst [vmem:[%s181 + $0x1c0] sm:$0xff] %v214
        %279 = vst [vmem:[%s181 + $0x1c8] sm:$0xff] %v215
        %280 = vst [vmem:[%s181 + $0x1d0] sm:$0xff] %v216
        %281 = vst [vmem:[%s181 + $0x1d8] sm:$0xff] %v217
        %282 = vst [vmem:[%s181 + $0x200] sm:$0xff] %v218
        %283 = vst [vmem:[%s181 + $0x208] sm:$0xff] %v219
        %284 = vst [vmem:[%s181 + $0x210] sm:$0xff] %v220
        %285 = vst [vmem:[%s181 + $0x218] sm:$0xff] %v221
        %286 = vst [vmem:[%s181 + $0x240] sm:$0xff] %v222
        %287 = vst [vmem:[%s181 + $0x248] sm:$0xff] %v223
        %288 = vst [vmem:[%s181 + $0x250] sm:$0xff] %v224
        %289 = vst [vmem:[%s181 + $0x258] sm:$0xff] %v225
        %290 = vst [vmem:[%s181 + $0x280] sm:$0xff] %v226
        %291 = vst [vmem:[%s181 + $0x288] sm:$0xff] %v227
        %292 = vst [vmem:[%s181 + $0x290] sm:$0xff] %v228
        %293 = vst [vmem:[%s181 + $0x298] sm:$0xff] %v229
        %294 = vst [vmem:[%s181 + $0x2c0] sm:$0xff] %v230
        %295 = vst [vmem:[%s181 + $0x2c8] sm:$0xff] %v231
        %296 = vst [vmem:[%s181 + $0x2d0] sm:$0xff] %v232
        %297 = vst [vmem:[%s181 + $0x2d8] sm:$0xff] %v233
        %298 = vst [vmem:[%s181 + $0x300] sm:$0xff] %v234
        %299 = vst [vmem:[%s181 + $0x308] sm:$0xff] %v235
        %300 = vst [vmem:[%s181 + $0x310] sm:$0xff] %v236
        %301 = vst [vmem:[%s181 + $0x318] sm:$0xff] %v237
        %302 = vst [vmem:[%s181 + $0x340] sm:$0xff] %v238
        %303 = vst [vmem:[%s181 + $0x348] sm:$0xff] %v239
        %304 = vst [vmem:[%s181 + $0x350] sm:$0xff] %v240
        %305 = vst [vmem:[%s181 + $0x358] sm:$0xff] %v241
        %306 = vst [vmem:[%s181 + $0x380] sm:$0xff] %v242
        %307 = vst [vmem:[%s181 + $0x388] sm:$0xff] %v243
        %308 = vst [vmem:[%s181 + $0x390] sm:$0xff] %v244
        %309 = vst [vmem:[%s181 + $0x398] sm:$0xff] %v245
        %310 = vst [vmem:[%s181 + $0x3c0] sm:$0xff] %v246
        %311 = vst [vmem:[%s181 + $0x3c8] sm:$0xff] %v247
        %312 = vst [vmem:[%s181 + $0x3d0] sm:$0xff] %v248
        %313 = vst [vmem:[%s181 + $0x3d8] sm:$0xff] %v249
        %v314 = vld [vmem:[%s162 + $0x8] sm:$0xff]
        %v315 = vld [vmem:[%s162 + $0x18] sm:$0xff]
        %v316 = vld [vmem:[%s162 + $0x28] sm:$0xff]
        %v317 = vld [vmem:[%s162 + $0x38] sm:$0xff]
        %v318 = vld [vmem:[%s162 + $0x48] sm:$0xff]
        %v319 = vld [vmem:[%s162 + $0x58] sm:$0xff]
        %v320 = vld [vmem:[%s162 + $0x68] sm:$0xff]
        %v321 = vld [vmem:[%s162 + $0x78] sm:$0xff]
        %v322 = vld [vmem:[%s162 + $0x88] sm:$0xff]
        %v323 = vld [vmem:[%s162 + $0x98] sm:$0xff]
        %v324 = vld [vmem:[%s162 + $0xa8] sm:$0xff]
        %v325 = vld [vmem:[%s162 + $0xb8] sm:$0xff]
        %v326 = vld [vmem:[%s162 + $0xc8] sm:$0xff]
        %v327 = vld [vmem:[%s162 + $0xd8] sm:$0xff]
        %v328 = vld [vmem:[%s162 + $0xe8] sm:$0xff]
        %v329 = vld [vmem:[%s162 + $0xf8] sm:$0xff]
        %v330 = vld [vmem:[%s162 + $0x108] sm:$0xff]
        %v331 = vld [vmem:[%s162 + $0x118] sm:$0xff]
        %v332 = vld [vmem:[%s162 + $0x128] sm:$0xff]
        %v333 = vld [vmem:[%s162 + $0x138] sm:$0xff]
        %v334 = vld [vmem:[%s162 + $0x148] sm:$0xff]
        %v335 = vld [vmem:[%s162 + $0x158] sm:$0xff]
        %v336 = vld [vmem:[%s162 + $0x168] sm:$0xff]
        %v337 = vld [vmem:[%s162 + $0x178] sm:$0xff]
        %v338 = vld [vmem:[%s162 + $0x188] sm:$0xff]
        %v339 = vld [vmem:[%s162 + $0x198] sm:$0xff]
        %v340 = vld [vmem:[%s162 + $0x1a8] sm:$0xff]
        %v341 = vld [vmem:[%s162 + $0x1b8] sm:$0xff]
        %v342 = vld [vmem:[%s162 + $0x1c8] sm:$0xff]
        %v343 = vld [vmem:[%s162 + $0x1d8] sm:$0xff]
        %v344 = vld [vmem:[%s162 + $0x1e8] sm:$0xff]
        %v345 = vld [vmem:[%s162 + $0x1f8] sm:$0xff]
        %v346 = vld [vmem:[%s162 + $0x208] sm:$0xff]
        %v347 = vld [vmem:[%s162 + $0x218] sm:$0xff]
        %v348 = vld [vmem:[%s162 + $0x228] sm:$0xff]
        %v349 = vld [vmem:[%s162 + $0x238] sm:$0xff]
        %v350 = vld [vmem:[%s162 + $0x248] sm:$0xff]
        %v351 = vld [vmem:[%s162 + $0x258] sm:$0xff]
        %v352 = vld [vmem:[%s162 + $0x268] sm:$0xff]
        %v353 = vld [vmem:[%s162 + $0x278] sm:$0xff]
        %v354 = vld [vmem:[%s162 + $0x288] sm:$0xff]
        %v355 = vld [vmem:[%s162 + $0x298] sm:$0xff]
        %v356 = vld [vmem:[%s162 + $0x2a8] sm:$0xff]
        %v357 = vld [vmem:[%s162 + $0x2b8] sm:$0xff]
        %v358 = vld [vmem:[%s162 + $0x2c8] sm:$0xff]
        %v359 = vld [vmem:[%s162 + $0x2d8] sm:$0xff]
        %v360 = vld [vmem:[%s162 + $0x2e8] sm:$0xff]
        %v361 = vld [vmem:[%s162 + $0x2f8] sm:$0xff]
        %v362 = vld [vmem:[%s162 + $0x308] sm:$0xff]
        %v363 = vld [vmem:[%s162 + $0x318] sm:$0xff]
        %v364 = vld [vmem:[%s162 + $0x328] sm:$0xff]
        %v365 = vld [vmem:[%s162 + $0x338] sm:$0xff]
        %v366 = vld [vmem:[%s162 + $0x348] sm:$0xff]
        %v367 = vld [vmem:[%s162 + $0x358] sm:$0xff]
        %v368 = vld [vmem:[%s162 + $0x368] sm:$0xff]
        %v369 = vld [vmem:[%s162 + $0x378] sm:$0xff]
        %v370 = vld [vmem:[%s162 + $0x388] sm:$0xff]
        %v371 = vld [vmem:[%s162 + $0x398] sm:$0xff]
        %v372 = vld [vmem:[%s162 + $0x3a8] sm:$0xff]
        %v373 = vld [vmem:[%s162 + $0x3b8] sm:$0xff]
        %v374 = vld [vmem:[%s162 + $0x3c8] sm:$0xff]
        %v375 = vld [vmem:[%s162 + $0x3d8] sm:$0xff]
        %v376 = vld [vmem:[%s162 + $0x3e8] sm:$0xff]
        %v377 = vld [vmem:[%s162 + $0x3f8] sm:$0xff]
        %s378 = scalar_lea.vmem %s181, 32 [#allocation5]
        %379 = vst [vmem:[%s378] sm:$0xff] %v314
        %380 = vst [vmem:[%s378 + $0x8] sm:$0xff] %v315
        %381 = vst [vmem:[%s378 + $0x10] sm:$0xff] %v316
        %382 = vst [vmem:[%s378 + $0x18] sm:$0xff] %v317
        %383 = vst [vmem:[%s378 + $0x40] sm:$0xff] %v318
        %384 = vst [vmem:[%s378 + $0x48] sm:$0xff] %v319
        %385 = vst [vmem:[%s378 + $0x50] sm:$0xff] %v320
        %386 = vst [vmem:[%s378 + $0x58] sm:$0xff] %v321
        %387 = vst [vmem:[%s378 + $0x80] sm:$0xff] %v322
        %388 = vst [vmem:[%s378 + $0x88] sm:$0xff] %v323
        %389 = vst [vmem:[%s378 + $0x90] sm:$0xff] %v324
        %390 = vst [vmem:[%s378 + $0x98] sm:$0xff] %v325
        %391 = vst [vmem:[%s378 + $0xc0] sm:$0xff] %v326
        %392 = vst [vmem:[%s378 + $0xc8] sm:$0xff] %v327
        %393 = vst [vmem:[%s378 + $0xd0] sm:$0xff] %v328
        %394 = vst [vmem:[%s378 + $0xd8] sm:$0xff] %v329
        %395 = vst [vmem:[%s378 + $0x100] sm:$0xff] %v330
        %396 = vst [vmem:[%s378 + $0x108] sm:$0xff] %v331
        %397 = vst [vmem:[%s378 + $0x110] sm:$0xff] %v332
        %398 = vst [vmem:[%s378 + $0x118] sm:$0xff] %v333
        %399 = vst [vmem:[%s378 + $0x140] sm:$0xff] %v334
        %400 = vst [vmem:[%s378 + $0x148] sm:$0xff] %v335
        %401 = vst [vmem:[%s378 + $0x150] sm:$0xff] %v336
        %402 = vst [vmem:[%s378 + $0x158] sm:$0xff] %v337
        %403 = vst [vmem:[%s378 + $0x180] sm:$0xff] %v338
        %404 = vst [vmem:[%s378 + $0x188] sm:$0xff] %v339
        %405 = vst [vmem:[%s378 + $0x190] sm:$0xff] %v340
        %406 = vst [vmem:[%s378 + $0x198] sm:$0xff] %v341
        %407 = vst [vmem:[%s378 + $0x1c0] sm:$0xff] %v342
        %408 = vst [vmem:[%s378 + $0x1c8] sm:$0xff] %v343
        %409 = vst [vmem:[%s378 + $0x1d0] sm:$0xff] %v344
        %410 = vst [vmem:[%s378 + $0x1d8] sm:$0xff] %v345
        %411 = vst [vmem:[%s378 + $0x200] sm:$0xff] %v346
        %412 = vst [vmem:[%s378 + $0x208] sm:$0xff] %v347
        %413 = vst [vmem:[%s378 + $0x210] sm:$0xff] %v348
        %414 = vst [vmem:[%s378 + $0x218] sm:$0xff] %v349
        %415 = vst [vmem:[%s378 + $0x240] sm:$0xff] %v350
        %416 = vst [vmem:[%s378 + $0x248] sm:$0xff] %v351
        %417 = vst [vmem:[%s378 + $0x250] sm:$0xff] %v352
        %418 = vst [vmem:[%s378 + $0x258] sm:$0xff] %v353
        %419 = vst [vmem:[%s378 + $0x280] sm:$0xff] %v354
        %420 = vst [vmem:[%s378 + $0x288] sm:$0xff] %v355
        %421 = vst [vmem:[%s378 + $0x290] sm:$0xff] %v356
        %422 = vst [vmem:[%s378 + $0x298] sm:$0xff] %v357
        %423 = vst [vmem:[%s378 + $0x2c0] sm:$0xff] %v358
        %424 = vst [vmem:[%s378 + $0x2c8] sm:$0xff] %v359
        %425 = vst [vmem:[%s378 + $0x2d0] sm:$0xff] %v360
        %426 = vst [vmem:[%s378 + $0x2d8] sm:$0xff] %v361
        %427 = vst [vmem:[%s378 + $0x300] sm:$0xff] %v362
        %428 = vst [vmem:[%s378 + $0x308] sm:$0xff] %v363
        %429 = vst [vmem:[%s378 + $0x310] sm:$0xff] %v364
        %430 = vst [vmem:[%s378 + $0x318] sm:$0xff] %v365
        %431 = vst [vmem:[%s378 + $0x340] sm:$0xff] %v366
        %432 = vst [vmem:[%s378 + $0x348] sm:$0xff] %v367
        %433 = vst [vmem:[%s378 + $0x350] sm:$0xff] %v368
        %434 = vst [vmem:[%s378 + $0x358] sm:$0xff] %v369
        %435 = vst [vmem:[%s378 + $0x380] sm:$0xff] %v370
        %436 = vst [vmem:[%s378 + $0x388] sm:$0xff] %v371
        %437 = vst [vmem:[%s378 + $0x390] sm:$0xff] %v372
        %438 = vst [vmem:[%s378 + $0x398] sm:$0xff] %v373
        %439 = vst [vmem:[%s378 + $0x3c0] sm:$0xff] %v374
        %440 = vst [vmem:[%s378 + $0x3c8] sm:$0xff] %v375
        %441 = vst [vmem:[%s378 + $0x3d0] sm:$0xff] %v376
        %442 = vst [vmem:[%s378 + $0x3d8] sm:$0xff] %v377
        %s443 = sand.u32 %s68, 1
        %s444 = scalar_lea.sflag [#allocation4], %s443
        %s445 = sand.u32 %s68, 1
        %s446 = smul.addr %s445, 1024
        %s447 = scalar_lea.vmem [#allocation5], %s446
        // Predicated region
        $region29: #{tpu_custom_call.1} parent=23 // pred_check
          %p448 = pneg %p78
        $region30: #{tpu_custom_call.1} parent=23 // pred_check_branch
          %450 = sbr.rel (%p448) target = $region32
        $region31: #{tpu_custom_call.1} parent=23 // pred_region
          #allocation9 [shape = 'u32[6]{0}', space=smem, size = 0x18, scoped, tag = 'DMA stride descriptor']
          %s451 = smul.u32 4, %s22
          %s452 = smul.u32 4, %s23
          %454 = vsyncadd %s444, 0
          %s455 = smul.addr %s452, 8
          %s456 = smul.addr %s451, 128
          %s457 = sadd.s32 %s455, %s456
          %s458 = smul.addr %s457, 8
          %s459 = scalar_lea.hbm %s1, %s458
          %s461 = sshll.u32 1, 14
          %s462 = sxor.u32 4294967295, %s461
          %s465 = sshll.u32 7, 18
          %s466 = sxor.u32 4294967295, %s465
          %s467 = sand.u32 0, %s466
          %s469 = sor.u32 %s467, 0
          %s470 = sshll.u32 %s447, 4
          %s471 = int_to_ptr.vmem [resolvable:$true] %s470
          %s472 = sshll.u32 %s459, 4
          %s473 = int_to_ptr.hbm [resolvable:$true] %s472
          %479 = sst [smem:[#allocation9]] 4096
          %s480 = scalar_lea.smem [#allocation9], 1
          %481 = sst [smem:[%s480]] 16384
          %s482 = scalar_lea.smem [#allocation9], 2
          %483 = sst [smem:[%s482]] 32
          %s484 = scalar_lea.smem [#allocation9], 3
          %485 = sst [smem:[%s484]] 128
          %s486 = scalar_lea.smem [#allocation9], 4
          %487 = sst [smem:[%s486]] 128
          %s488 = scalar_lea.smem [#allocation9], 5
          %489 = sst [smem:[%s488]] 8
          %491 = dma.general %s471, 16384, %s473, %s444, [#allocation8], [#allocation9], %s469, 0
        $region32: #{tpu_custom_call.1} parent=23 // pred_fallthru
          _
      $region24: #{tpu_custom_call.1} parent=5 // pred_fallthru
        _
      %p492 = scmp.le.s32.totalorder 2, %s13
      // Predicated region
      $region33: #{tpu_custom_call.1} parent=5 // pred_check
        %p493 = pneg %p492
      $region34: #{tpu_custom_call.1} parent=5 // pred_check_branch
        %495 = sbr.rel (%p493) target = $region36
      $region35: #{tpu_custom_call.1} parent=5 // pred_region
        %s496 = ssub.s32 %s13, 2
        // Predicated region
        $region37: #{tpu_custom_call.1} parent=35 // pred_check
          %p497 = pneg %p84
        $region38: #{tpu_custom_call.1} parent=35 // pred_check_branch
          %499 = sbr.rel (%p497) target = $region40
        $region39: #{tpu_custom_call.1} parent=35 // pred_region
          %s500 = sand.u32 %s69, 1
          %s501 = scalar_lea.sflag [#allocation4], %s500
          %s502 = sand.u32 %s69, 1
          %s503 = smul.addr %s502, 1024
          %s504 = scalar_lea.vmem [#allocation5], %s503
          %506 = dma.done %s501, 16384
        $region40: #{tpu_custom_call.1} parent=35 // pred_fallthru
          _
      $region36: #{tpu_custom_call.1} parent=5 // pred_fallthru
        _
    $region6: #{tpu_custom_call.1} parent=1 // loop_footer
      %s17 = sadd.s32 1, %s13
    $region7: #{tpu_custom_call.1} parent=1 // loop_footer_branch
      %12 = sbr.rel target = $region3
    $region8: #{tpu_custom_call.1} parent=1 // loop_exit
      _
    %507 = vsyncpa [#allocation3], 1
    %s508 = scalar_lea.sflag [#allocation3], 1
    %509 = vsyncpa %s508, 1
    %510 = vsyncpa [#allocation4], 1
    %s511 = scalar_lea.sflag [#allocation4], 1
    %512 = vsyncpa %s511, 1

</llo_original>
